<compile_context>
chip_gen: v7x
topology: tpu7x:2x2x1
jax: 0.10.0
libtpu: 0.0.40
codegen_flags: <defaults>
</compile_context>

<pallas_src>
import functools
import math

import jax
import jax.numpy as jnp
from jax.experimental import pallas as pl
from jax.experimental.pallas import tpu as pltpu


def _round_up(x, m):
    return ((x + m - 1) // m) * m


@functools.lru_cache(maxsize=None)
def _vmem_limit_bytes():
    # ~75% of physical VMEM per generation; conservative 48 MiB fallback (v7x = 64 MiB).
    try:
        return int(pltpu.get_tpu_info().vmem_capacity_bytes) * 3 // 4
    except Exception:
        return 48 << 20


def _row_tiles(n_rows, tm):
    """Near-even row tiling: pad only to a multiple of 8 per tile, not to n_tiles*tm_max."""
    n8 = _round_up(n_rows, 8)
    tm = min(tm, n8)
    n_tiles = pl.cdiv(n8, tm)
    tm = _round_up(pl.cdiv(n8, n_tiles), 8)
    return n_tiles, tm, n_tiles * tm


# ----------------------------------------------------------------------------------
# Row-tiled linear kernel: y = x @ W + b
# ----------------------------------------------------------------------------------
def _linear_kernel(x_ref, w_ref, b_ref, o_ref):
    x = x_ref[...].astype(jnp.bfloat16)
    y = jnp.dot(x, w_ref[...], preferred_element_type=jnp.float32)
    o_ref[...] = (y + b_ref[...]).astype(o_ref.dtype)


def _linear(x2d, w, b, *, out_dtype=jnp.float32, tm=256):
    """x2d: (N, d_in); w: (d_in, d_out); b: (d_out,) -> (N, d_out) out_dtype."""
    N, d_in = x2d.shape
    d_out = w.shape[1]
    n_tiles, tm, n_pad = _row_tiles(N, tm)
    if n_pad != N:
        x2d = jnp.pad(x2d, ((0, n_pad - N), (0, 0)))

    out = pl.pallas_call(
        _linear_kernel,
        out_shape=jax.ShapeDtypeStruct((n_pad, d_out), out_dtype),
        grid_spec=pltpu.PrefetchScalarGridSpec(
            num_scalar_prefetch=0,
            grid=(n_tiles,),
            in_specs=[
                pl.BlockSpec((tm, d_in), lambda i: (i, 0)),
                pl.BlockSpec((d_in, d_out), lambda i: (0, 0),
                             pipeline_mode=pl.Buffered(1)),        # resident weights
                pl.BlockSpec((1, d_out), lambda i: (0, 0),
                             pipeline_mode=pl.Buffered(1)),        # resident bias
            ],
            out_specs=pl.BlockSpec((tm, d_out), lambda i: (i, 0)),
        ),
        compiler_params=pltpu.CompilerParams(
            dimension_semantics=("parallel",),
            vmem_limit_bytes=_vmem_limit_bytes(),
        ),
    )(x2d, w.astype(jnp.bfloat16), b.reshape(1, d_out).astype(jnp.float32))
    return out[:N]


# ----------------------------------------------------------------------------------
# Fused QKV projection (self-attention): x read once, three lane-dense bf16 outputs
# ----------------------------------------------------------------------------------
def _qkv_kernel(x_ref, w_ref, b_ref, q_ref, k_ref, v_ref):
    x = x_ref[...].astype(jnp.bfloat16)
    y = jnp.dot(x, w_ref[...], preferred_element_type=jnp.float32) + b_ref[...]
    d = q_ref.shape[-1]
    q_ref[...] = y[:, :d].astype(q_ref.dtype)
    k_ref[...] = y[:, d:2 * d].astype(k_ref.dtype)
    v_ref[...] = y[:, 2 * d:].astype(v_ref.dtype)


def _qkv_projection(x2d, wqkv, bqkv, d_model, *, tm=256):
    N, d_in = x2d.shape
    n_tiles, tm, n_pad = _row_tiles(N, tm)
    if n_pad != N:
        x2d = jnp.pad(x2d, ((0, n_pad - N), (0, 0)))
    out_sh = jax.ShapeDtypeStruct((n_pad, d_model), jnp.bfloat16)

    q, k, v = pl.pallas_call(
        _qkv_kernel,
        out_shape=(out_sh, out_sh, out_sh),
        grid_spec=pltpu.PrefetchScalarGridSpec(
            num_scalar_prefetch=0,
            grid=(n_tiles,),
            in_specs=[
                pl.BlockSpec((tm, d_in), lambda i: (i, 0)),
                pl.BlockSpec((d_in, 3 * d_model), lambda i: (0, 0),
                             pipeline_mode=pl.Buffered(1)),
                pl.BlockSpec((1, 3 * d_model), lambda i: (0, 0),
                             pipeline_mode=pl.Buffered(1)),
            ],
            out_specs=(
                pl.BlockSpec((tm, d_model), lambda i: (i, 0)),
                pl.BlockSpec((tm, d_model), lambda i: (i, 0)),
                pl.BlockSpec((tm, d_model), lambda i: (i, 0)),
            ),
        ),
        compiler_params=pltpu.CompilerParams(
            dimension_semantics=("parallel",),
            vmem_limit_bytes=_vmem_limit_bytes(),
        ),
    )(x2d, wqkv.astype(jnp.bfloat16), bqkv.reshape(1, -1).astype(jnp.float32))
    return q[:N], k[:N], v[:N]


# ----------------------------------------------------------------------------------
# Flash-style scaled-dot-product attention (online softmax, per-head column slices)
# ----------------------------------------------------------------------------------
def _flash_attention_kernel(q_ref, k_ref, v_ref, kmask_ref, o_ref,
                            m_ref, l_ref, acc_ref, *, heads, d_k, causal, tq, tk):
    qi = pl.program_id(1)
    ki = pl.program_id(2)

    @pl.when(ki == 0)
    def _init():
        m_ref[...] = jnp.full_like(m_ref, -jnp.inf)
        l_ref[...] = jnp.zeros_like(l_ref)
        acc_ref[...] = jnp.zeros_like(acc_ref)

    def _process():
        q = q_ref[0]                                   # (tq, d_model) bf16; Wq pre-scaled
        k = k_ref[0]                                   # (tk, d_model) bf16
        v = v_ref[0]                                   # (tk, d_model) bf16

        neg = jnp.float32(-1e9)
        allowed = (kmask_ref[0] != 0)                  # (1, tk) key-padding mask
        if causal:
            row = qi * tq + jax.lax.broadcasted_iota(jnp.int32, (tq, tk), 0)
            col = ki * tk + jax.lax.broadcasted_iota(jnp.int32, (tq, tk), 1)
            allowed = jnp.logical_and(allowed, col <= row)   # (tq, tk)

        for hh in range(heads):
            lo, hi = hh * d_k, (hh + 1) * d_k
            # QK^T on the MXU (contraction over the shared last dim; f32 accumulate).
            s = jax.lax.dot_general(
                q[:, lo:hi], k[:, lo:hi],
                dimension_numbers=(((1,), (1,)), ((), ())),
                preferred_element_type=jnp.float32)          # (tq, tk)
            s = jnp.where(allowed, s, neg)                   # masked_fill(mask==0, -1e9)

            m_prev = m_ref[hh]                               # (tq, 1)
            m_new = jnp.maximum(m_prev, jnp.max(s, axis=-1, keepdims=True))
            alpha = jnp.exp(m_prev - m_new)                  # (tq, 1)
            p = jnp.exp(s - m_new)                           # (tq, tk) f32
            l_ref[hh] = alpha * l_ref[hh] + jnp.sum(p, axis=-1, keepdims=True)
            acc_ref[hh] = alpha * acc_ref[hh] + jnp.dot(
                p.astype(jnp.bfloat16), v[:, lo:hi],
                preferred_element_type=jnp.float32)          # (tq, d_k)
            m_ref[hh] = m_new

    if causal:
        # Skip KV tiles that lie entirely in the future of this Q tile.
        pl.when(ki * tk <= qi * tq + (tq - 1))(_process)
    else:
        _process()

    @pl.when(ki == pl.num_programs(2) - 1)
    def _finalize():
        # Lane-dense (tq, d_model) output: heads written as column blocks; reciprocal
        # applied to the d_k-wide accumulator (not the Sk-wide probabilities).
        for hh in range(heads):
            o_ref[0, :, hh * d_k:(hh + 1) * d_k] = (
                acc_ref[hh] * pl.reciprocal(l_ref[hh], approx=True)
            ).astype(o_ref.dtype)


def _flash_attention(qp, kp, vp, kmask, *, heads, causal, tq=256, tk=256):
    """qp: (B, Sq, d_model) bf16; kp/vp: (B, Sk, d_model) bf16; kmask: (B, 1, Sk) int32."""
    B, Sq, d_model = qp.shape
    Sk = kp.shape[1]
    d_k = d_model // heads

    tq = min(tq, _round_up(Sq, 8))
    tk = min(tk, _round_up(Sk, 8))
    sq_pad = _round_up(Sq, tq)
    sk_pad = _round_up(Sk, tk)
    if sq_pad != Sq:
        qp = jnp.pad(qp, ((0, 0), (0, sq_pad - Sq), (0, 0)))
    if sk_pad != Sk:
        kp = jnp.pad(kp, ((0, 0), (0, sk_pad - Sk), (0, 0)))
        vp = jnp.pad(vp, ((0, 0), (0, sk_pad - Sk), (0, 0)))
        kmask = jnp.pad(kmask, ((0, 0), (0, 0), (0, sk_pad - Sk)))  # pads masked out

    nq, nk = sq_pad // tq, sk_pad // tk
    kernel = functools.partial(_flash_attention_kernel, heads=heads, d_k=d_k,
                               causal=causal, tq=tq, tk=tk)

    out = pl.pallas_call(
        kernel,
        out_shape=jax.ShapeDtypeStruct((B, sq_pad, d_model), jnp.bfloat16),
        grid_spec=pltpu.PrefetchScalarGridSpec(
            num_scalar_prefetch=0,
            grid=(B, nq, nk),
            in_specs=[
                pl.BlockSpec((1, tq, d_model), lambda b, i, j: (b, i, 0)),
                pl.BlockSpec((1, tk, d_model), lambda b, i, j: (b, j, 0)),
                pl.BlockSpec((1, tk, d_model), lambda b, i, j: (b, j, 0)),
                pl.BlockSpec((1, 1, tk), lambda b, i, j: (b, 0, j)),
            ],
            out_specs=pl.BlockSpec((1, tq, d_model), lambda b, i, j: (b, i, 0)),
            scratch_shapes=[
                pltpu.VMEM((heads, tq, 1), jnp.float32),     # running max
                pltpu.VMEM((heads, tq, 1), jnp.float32),     # running denominator
                pltpu.VMEM((heads, tq, d_k), jnp.float32),   # running PV accumulator
            ],
        ),
        compiler_params=pltpu.CompilerParams(
            dimension_semantics=("parallel", "parallel", "arbitrary"),
            vmem_limit_bytes=_vmem_limit_bytes(),
        ),
    )(qp, kp, vp, kmask)
    return out[:, :Sq, :]


# ----------------------------------------------------------------------------------
# Full MultiHeadedAttention forward
# ----------------------------------------------------------------------------------
def multi_headed_attention(query, key, value, wq, bq, wk, bk, wv, bv, wo, bo,
                           *, h, mask=None, causal=False, fuse_qkv=None,
                           tm=256, tq=256, tk=256):
    """query: (B, Sq, d_model); key/value: (B, Sk, d_model).
    Weights stored as (in_features, out_features); biases (out_features,).
    mask: optional key-padding mask of shape (B, Sk) or (B, 1, Sk) (1=keep, 0=mask).
    causal: apply the "subsequent positions" mask, generated in-kernel.
    fuse_qkv: fuse the Q/K/V projections (self-attention only). If None it is
      auto-detected via object identity (pass True explicitly under jit)."""
    B, Sq, d_model = query.shape
    Sk = key.shape[1]
    assert d_model % h == 0
    d_k = d_model // h
    sm_scale = 1.0 / math.sqrt(d_k)

    # Fold 1/sqrt(d_k) into the Q projection (zero runtime cost).
    wq_s, bq_s = wq * sm_scale, bq * sm_scale

    q2d = query.reshape(B * Sq, d_model)
    k2d = key.reshape(B * Sk, d_model)
    v2d = value.reshape(B * Sk, d_model)

    if fuse_qkv is None:
        fuse_qkv = (query is key) and (key is value)

    if fuse_qkv:
        wqkv = jnp.concatenate([wq_s, wk, wv], axis=1)     # (d_model, 3*d_model)
        bqkv = jnp.concatenate([bq_s, bk, bv], axis=0)
        qp2d, kp2d, vp2d = _qkv_projection(q2d, wqkv, bqkv, d_model, tm=tm)
    else:
        qp2d = _linear(q2d, wq_s, bq_s, out_dtype=jnp.bfloat16, tm=tm)
        kp2d = _linear(k2d, wk, bk, out_dtype=jnp.bfloat16, tm=tm)
        vp2d = _linear(v2d, wv, bv, out_dtype=jnp.bfloat16, tm=tm)

    qp = qp2d.reshape(B, Sq, d_model)
    kp = kp2d.reshape(B, Sk, d_model)
    vp = vp2d.reshape(B, Sk, d_model)

    if mask is None:
        kmask = jnp.ones((B, 1, Sk), jnp.int32)
    else:
        kmask = mask.reshape(B, 1, Sk).astype(jnp.int32)

    ctx = _flash_attention(qp, kp, vp, kmask, heads=h, causal=causal, tq=tq, tk=tk)

    out2d = _linear(ctx.reshape(B * Sq, d_model), wo, bo,
                    out_dtype=jnp.float32, tm=tm)
    return out2d.reshape(B, Sq, d_model)


if __name__ == "__main__":
    batch, seq, d_model, h = 2, 8, 32, 4

    key0 = jax.random.PRNGKey(0)
    k_x, k_wq, k_bq, k_wk, k_bk, k_wv, k_bv, k_wo, k_bo = jax.random.split(key0, 9)

    x = jax.random.normal(k_x, (batch, seq, d_model), dtype=jnp.float32)

    # nn.Linear-style uniform(-1/sqrt(fan_in), 1/sqrt(fan_in)); stored as (in, out)
    lim = 1.0 / math.sqrt(d_model)
    init_w = lambda kk: jax.random.uniform(kk, (d_model, d_model),
                                           minval=-lim, maxval=lim, dtype=jnp.float32)
    init_b = lambda kk: jax.random.uniform(kk, (d_model,),
                                           minval=-lim, maxval=lim, dtype=jnp.float32)
    wq, wk, wv, wo = init_w(k_wq), init_w(k_wk), init_w(k_wv), init_w(k_wo)
    bq, bk, bv, bo = init_b(k_bq), init_b(k_bk), init_b(k_bv), init_b(k_bo)

    out = multi_headed_attention(x, x, x, wq, bq, wk, bk, wv, bv, wo, bo,
                                 h=h, causal=True, fuse_qkv=True)
    out = jax.block_until_ready(out)

    # Pure-JAX f32 reference (PyTorch module forward in eval mode with a causal mask).
    d_k = d_model // h
    causal_mask = jnp.tril(jnp.ones((seq, seq), jnp.int32))[None, :, :]
    Q = (x @ wq + bq).reshape(batch, seq, h, d_k).transpose(0, 2, 1, 3)
    K = (x @ wk + bk).reshape(batch, seq, h, d_k).transpose(0, 2, 1, 3)
    V = (x @ wv + bv).reshape(batch, seq, h, d_k).transpose(0, 2, 1, 3)
    scores = jnp.einsum("bhqd,bhkd->bhqk", Q, K) / math.sqrt(d_k)
    scores = jnp.where(causal_mask[:, None, :, :] == 0, -1e9, scores)
    p_attn = jax.nn.softmax(scores, axis=-1)
    ctx = jnp.einsum("bhqk,bhkd->bhqd", p_attn, V)
    ctx = ctx.transpose(0, 2, 1, 3).reshape(batch, seq, d_model)
    ref = ctx @ wo + bo

    assert out.shape == (batch, seq, d_model)
    max_err = float(jnp.max(jnp.abs(out - ref)))
    # bf16 matmul operands / bf16 activation handoff (f32 accumulation) vs f32 reference
    assert jnp.allclose(out, ref, atol=5e-2, rtol=5e-2), max_err
    print("KERNEL_OK")
</pallas_src>

<mosaic_0001>
module attributes {stable_mosaic.version = 11 : i64} {
  func.func @_qkv_kernel(%arg0: i32, %arg1: memref<16x32xf32, #tpu.memory_space<vmem>>, %arg2: memref<32x96xbf16, #tpu.memory_space<vmem>>, %arg3: memref<1x96xf32, #tpu.memory_space<vmem>>, %arg4: memref<16x32xbf16, #tpu.memory_space<vmem>>, %arg5: memref<16x32xbf16, #tpu.memory_space<vmem>>, %arg6: memref<16x32xbf16, #tpu.memory_space<vmem>>) attributes {dimension_semantics = [#tpu.dimension_semantics<parallel>], iteration_bounds = array<i64: 1>, scalar_prefetch = 0 : i64, scratch_operands = 0 : i64, tpu.core_type = #tpu.core_type<tc>, window_params = [{transform_indices = @transform_0, window_bounds = array<i64: 16, 32>}, {pipeline_mode = #tpu.pipeline_mode<synchronous>, transform_indices = @transform_1, window_bounds = array<i64: 32, 96>}, {pipeline_mode = #tpu.pipeline_mode<synchronous>, transform_indices = @transform_2, window_bounds = array<i64: 1, 96>}, {transform_indices = @transform_3, window_bounds = array<i64: 16, 32>}, {transform_indices = @transform_4, window_bounds = array<i64: 16, 32>}, {transform_indices = @transform_5, window_bounds = array<i64: 16, 32>}]} {
    %c0 = arith.constant 0 : index
    %c0_0 = arith.constant 0 : index
    %0 = vector.load %arg1[%c0, %c0_0] : memref<16x32xf32, #tpu.memory_space<vmem>>, vector<16x32xf32>
    %1 = arith.truncf %0 : vector<16x32xf32> to vector<16x32xbf16>
    %c0_1 = arith.constant 0 : index
    %c0_2 = arith.constant 0 : index
    %2 = vector.load %arg2[%c0_1, %c0_2] : memref<32x96xbf16, #tpu.memory_space<vmem>>, vector<32x96xbf16>
    %cst = arith.constant dense<0.000000e+00> : vector<16x96xf32>
    %3 = tpu.matmul %1, %2, %cst {dimension_numbers = #tpu.dot_dimension_numbers<[1], [0], [0], [1], [0, 0, 1, 1], [], []>} : vector<16x32xbf16>, vector<32x96xbf16>, vector<16x96xf32> -> vector<16x96xf32>
    %c0_3 = arith.constant 0 : index
    %c0_4 = arith.constant 0 : index
    %4 = vector.load %arg3[%c0_3, %c0_4] : memref<1x96xf32, #tpu.memory_space<vmem>>, vector<1x96xf32>
    %5 = vector.broadcast %4 : vector<1x96xf32> to vector<16x96xf32>
    %6 = arith.addf %3, %5 : vector<16x96xf32>
    %7 = vector.extract_strided_slice %6 {offsets = [0, 0], sizes = [16, 32], strides = [1, 1]} : vector<16x96xf32> to vector<16x32xf32>
    %8 = arith.truncf %7 : vector<16x32xf32> to vector<16x32xbf16>
    %c0_5 = arith.constant 0 : index
    %c0_6 = arith.constant 0 : index
    %9 = vector.load %arg4[%c0_5, %c0_6] : memref<16x32xbf16, #tpu.memory_space<vmem>>, vector<16x32xbf16>
    tpu.vector_store %arg4[%c0_5, %c0_6], %8 {strides = array<i32>} : memref<16x32xbf16, #tpu.memory_space<vmem>>, vector<16x32xbf16>,
    %10 = vector.extract_strided_slice %6 {offsets = [0, 32], sizes = [16, 32], strides = [1, 1]} : vector<16x96xf32> to vector<16x32xf32>
    %11 = arith.truncf %10 : vector<16x32xf32> to vector<16x32xbf16>
    %c0_7 = arith.constant 0 : index
    %c0_8 = arith.constant 0 : index
    %12 = vector.load %arg5[%c0_7, %c0_8] : memref<16x32xbf16, #tpu.memory_space<vmem>>, vector<16x32xbf16>
    tpu.vector_store %arg5[%c0_7, %c0_8], %11 {strides = array<i32>} : memref<16x32xbf16, #tpu.memory_space<vmem>>, vector<16x32xbf16>,
    %13 = vector.extract_strided_slice %6 {offsets = [0, 64], sizes = [16, 32], strides = [1, 1]} : vector<16x96xf32> to vector<16x32xf32>
    %14 = arith.truncf %13 : vector<16x32xf32> to vector<16x32xbf16>
    %c0_9 = arith.constant 0 : index
    %c0_10 = arith.constant 0 : index
    %15 = vector.load %arg6[%c0_9, %c0_10] : memref<16x32xbf16, #tpu.memory_space<vmem>>, vector<16x32xbf16>
    tpu.vector_store %arg6[%c0_9, %c0_10], %14 {strides = array<i32>} : memref<16x32xbf16, #tpu.memory_space<vmem>>, vector<16x32xbf16>,
    return
  }
  func.func @transform_0(%arg0: i32) -> (i32, i32) {
    %c0_i32 = arith.constant 0 : i32
    %c0_i32_0 = arith.constant 0 : i32
    return %arg0, %c0_i32 : i32, i32
  }
  func.func @transform_1(%arg0: i32) -> (i32, i32) {
    %c0_i32 = arith.constant 0 : i32
    %c0_i32_0 = arith.constant 0 : i32
    %c0_i32_1 = arith.constant 0 : i32
    return %c0_i32, %c0_i32_0 : i32, i32
  }
  func.func @transform_2(%arg0: i32) -> (i32, i32) {
    %c0_i32 = arith.constant 0 : i32
    %c0_i32_0 = arith.constant 0 : i32
    %c0_i32_1 = arith.constant 0 : i32
    return %c0_i32, %c0_i32_0 : i32, i32
  }
  func.func @transform_3(%arg0: i32) -> (i32, i32) {
    %c0_i32 = arith.constant 0 : i32
    %c0_i32_0 = arith.constant 0 : i32
    return %arg0, %c0_i32 : i32, i32
  }
  func.func @transform_4(%arg0: i32) -> (i32, i32) {
    %c0_i32 = arith.constant 0 : i32
    %c0_i32_0 = arith.constant 0 : i32
    return %arg0, %c0_i32 : i32, i32
  }
  func.func @transform_5(%arg0: i32) -> (i32, i32) {
    %c0_i32 = arith.constant 0 : i32
    %c0_i32_0 = arith.constant 0 : i32
    return %arg0, %c0_i32 : i32, i32
  }
}

</mosaic_0001>

<llo_original>
// kernel: tpu_custom_call.1
$region0: #{tpu_custom_call.1}
  #allocation0 [shape = 'u32[]', space=smem, size = 0x4, offset = 0x4, fixed_abs, tag = 'smem constant byte address 0x4 - core index']
  #allocation1 [shape = 'u32[144,128]{1,0:T(1,128)}', space=vmem, size = 0x12000, scoped, tag = 'internal scratch']
  %s0 = inlined_call_operand.hbm [shape: f32[16,32], index: 0, kind: input, shape index: {}]
  %s1 = inlined_call_operand.hbm [shape: bf16[32,96], index: 1, kind: input, shape index: {}]
  %s2 = inlined_call_operand.vmem [shape: f32[1,96], index: 2, kind: input, shape index: {}]
  %s3 = inlined_call_operand.hbm [shape: bf16[16,32], index: 3, kind: output, shape index: {0}]
  %s4 = inlined_call_operand.hbm [shape: bf16[16,32], index: 4, kind: output, shape index: {1}]
  %s5 = inlined_call_operand.hbm [shape: bf16[16,32], index: 5, kind: output, shape index: {2}]
  %6 = xla_tuple %s3, %s4, %s5
  %s7 = sld [smem:[#allocation0]]
  $region46: #{tpu_custom_call.1} parent=0
    _
  %s9 = ssub.s32 1, %s7
  %s10 = scalar_select 0, %s9, %s7
  $region1: #{tpu_custom_call.1} parent=0
    #allocation2 [shape = 'u8[8192]{0}', space=vmem, size = 0x2000, scoped, tag = 'input window, operand 0, single buffered']
    #allocation3 [shape = 's32[1]{0}', space=sflag, size = 0x4, scoped, tag = 'scoped memory for tpu_custom_call.1']
    #allocation4 [shape = 's32[1]{0}', space=sflag, size = 0x4, scoped, tag = 'scoped memory for tpu_custom_call.1']
    #allocation5 [shape = 'u8[8192]{0}', space=vmem, size = 0x2000, scoped, tag = 'input window, operand 1, single buffered']
    #allocation6 [shape = 's32[1]{0}', space=sflag, size = 0x4, scoped, tag = 'scoped memory for tpu_custom_call.1']
    #allocation7 [shape = 'u8[4096]{0}', space=vmem, size = 0x1000, scoped, tag = 'output window, operand 0, single buffered']
    #allocation8 [shape = 'u8[4096]{0}', space=vmem, size = 0x1000, scoped, tag = 'output window, operand 1, single buffered']
    #allocation9 [shape = 's32[1]{0}', space=sflag, size = 0x4, scoped, tag = 'scoped memory for tpu_custom_call.1']
    #allocation10 [shape = 'u8[4096]{0}', space=vmem, size = 0x1000, scoped, tag = 'output window, operand 2, single buffered']
    %11 = vsyncpa [#allocation3], 0
    %12 = vsyncpa [#allocation6], 0
    %13 = vsyncpa [#allocation4], 0
    %14 = vsyncpa [#allocation9], 0
    // Predicated region
    $region2: #{tpu_custom_call.1} parent=1 // pred_check
      _
    $region3: #{tpu_custom_call.1} parent=1 // pred_check_branch
      %16 = sbr.rel (0) target = $region5
    $region4: #{tpu_custom_call.1} parent=1 // pred_region
      %s18 = ssub.s32 256, 256
      %19 = vsyncadd [#allocation3], %s18
      %s20 = sshll.u32 [#allocation2], 4
      %s21 = int_to_ptr.vmem [resolvable:$true] %s20
      %26 = dma.hbm_to_vmem [thread:$0]  %s0, 256, %s21, [#allocation3], 128, 128, 8
    $region5: #{tpu_custom_call.1} parent=1 // pred_fallthru
      _
    // Predicated region
    $region6: #{tpu_custom_call.1} parent=1 // pred_check
      _
    $region7: #{tpu_custom_call.1} parent=1 // pred_check_branch
      %28 = sbr.rel (0) target = $region9
    $region8: #{tpu_custom_call.1} parent=1 // pred_region
      %s30 = ssub.s32 256, 256
      %31 = vsyncadd [#allocation6], %s30
      %s32 = sshll.u32 [#allocation5], 4
      %s33 = int_to_ptr.vmem [resolvable:$true] %s32
      %38 = dma.hbm_to_vmem [thread:$0]  %s1, 256, %s33, [#allocation6], 64, 64, 4
    $region9: #{tpu_custom_call.1} parent=1 // pred_fallthru
      _
    // Predicated region
    $region10: #{tpu_custom_call.1} parent=1 // pred_check
      _
    $region11: #{tpu_custom_call.1} parent=1 // pred_check_branch
      %40 = sbr.rel (0) target = $region13
    $region12: #{tpu_custom_call.1} parent=1 // pred_region
      _
    $region13: #{tpu_custom_call.1} parent=1 // pred_fallthru
      _
    // Predicated region
    $region14: #{tpu_custom_call.1} parent=1 // pred_check
      _
    $region15: #{tpu_custom_call.1} parent=1 // pred_check_branch
      %42 = sbr.rel (0) target = $region17
    $region16: #{tpu_custom_call.1} parent=1 // pred_region
      %43 = dma.done [#allocation3], 256
    $region17: #{tpu_custom_call.1} parent=1 // pred_fallthru
      _
    // Predicated region
    $region18: #{tpu_custom_call.1} parent=1 // pred_check
      _
    $region19: #{tpu_custom_call.1} parent=1 // pred_check_branch
      %45 = sbr.rel (0) target = $region21
    $region20: #{tpu_custom_call.1} parent=1 // pred_region
      %46 = dma.done [#allocation6], 256
    $region21: #{tpu_custom_call.1} parent=1 // pred_fallthru
      _
    %v48 = vld [vmem:[#allocation2] sm:$0xff]
    %v49 = vld [vmem:[#allocation2 + $0x8] sm:$0xff]
    %v50 = vpack.c.bf16 %v49, %v48
    %v51 = vld [vmem:[#allocation5] sm:$0xf]
    %v52 = vld [vmem:[#allocation5 + $0x4] sm:$0xf]
    %v53 = vld [vmem:[#allocation5 + $0x8] sm:$0xf]
    %v54 = vld [vmem:[#allocation5 + $0xc] sm:$0xf]
    %v55 = vld [vmem:[%s2] sm:$0x1]
    %v57 = vlaneseq
    %v58 = vshrl.u32 %v57, 7
    %v59 = vsub.s32 0, %v58
    %v60 = vrot.slane %v55, %v59
    %v66 = vunpack.c.l.b16 %v51
    %v67 = vunpack.c.l.b16 %v52
    %v68 = vunpack.c.l.b16 %v53
    %v69 = vunpack.c.l.b16 %v54
    %v70 = vpack.c.b16 %v67, %v66
    %v71 = vpack.c.b16 %v69, %v68
    %vm74 = vcmask 261120
    %v76 = vsel %vm74, %v50, 0
    %78 = vmatprep.subr.bf16.mxu0 0
    %79 = vmatpush1.bf16.msra.mxu0 %v70
    %80 = vmatprep.subr.bf16.mxu0 0
    %81 = vmatpush1.bf16.msra.mxu0 %v71
    %82 = vmatprep.subr.bf16.mxu0 0
    %83 = vmatpush1.bf16.msra.mxu0 0
    %84 = vmatprep.subr.bf16.mxu0 0
    %85 = vmatpush1.bf16.msra.mxu0 0
    %86 = vmatprep.subr.bf16.mxu0 0
    %87 = vmatpush1.bf16.msra.mxu0 0
    %88 = vmatprep.subr.bf16.mxu0 0
    %89 = vmatpush1.bf16.msra.mxu0 0
    %90 = vmatprep.subr.bf16.mxu0 0
    %91 = vmatpush1.bf16.msra.mxu0 0
    %92 = vmatprep.subr.bf16.mxu0 0
    %93 = vmatpush1.bf16.msra.mxu0 0
    %94 = vmatprep.subr.bf16.mxu0 0
    %95 = vmatpush1.bf16.msra.mxu0 0
    %96 = vmatprep.subr.bf16.mxu0 0
    %97 = vmatpush1.bf16.msra.mxu0 0
    %98 = vmatprep.subr.bf16.mxu0 0
    %99 = vmatpush1.bf16.msra.mxu0 0
    %100 = vmatprep.subr.bf16.mxu0 0
    %101 = vmatpush1.bf16.msra.mxu0 0
    %102 = vmatprep.subr.bf16.mxu0 0
    %103 = vmatpush1.bf16.msra.mxu0 0
    %104 = vmatprep.subr.bf16.mxu0 0
    %105 = vmatpush1.bf16.msra.mxu0 0
    %106 = vmatprep.subr.bf16.mxu0 0
    %107 = vmatpush1.bf16.msra.mxu0 0
    %108 = vmatprep.subr.bf16.mxu0 0
    %109 = vmatpush1.bf16.msra.mxu0 0
    %110 = vmatprep.mubr.bf16.mxu0 0
    %111 = vmatmul.mubr.bf16.gmra.mrb[0].mxu0 %v76
    %v112 = vpop.f32.mrb[0].mxu0
    %v113 = vadd.f32 %v60, %v112
    %v114 = vpop.f32.mrb[0].mxu0
    %v115 = vpop.f32.mrb[0].mxu0
    %v116 = vadd.f32 %v60, %v115
    %v117 = vpop.f32.mrb[0].mxu0
    %118 = vdwg.mxu0
    %v119 = vpack.c.bf16 %v116, %v113
    %v121 = vunpack.c.l.b16 %v119
    %v122 = vunpack.c.h.b16 %v119
    %v123 = vpack.c.b16 %v121, %v121
    %v124 = vpack.c.b16 %v122, %v122
    %vm127 = vcmask 257024
    %128 = vst.msk [vmem:[#allocation7] sm:$0xf] %vm127, %v123
    %129 = vst.msk [vmem:[#allocation7 + $0x4] sm:$0xf] %vm127, %v124
    %130 = vrot.lane.b32.xlu0 %v123, 96
    %v131 = vpop.permute.xlu0 %130
    %132 = vrot.lane.b32.xlu0 %v124, 96
    %v133 = vpop.permute.xlu0 %132
    %136 = vst.msk [vmem:[#allocation8] sm:$0xf] %vm127, %v131
    %137 = vst.msk [vmem:[#allocation8 + $0x4] sm:$0xf] %vm127, %v133
    %138 = vrot.lane.b32.xlu0 %v123, 64
    %v139 = vpop.permute.xlu0 %138
    %140 = vrot.lane.b32.xlu0 %v124, 64
    %v141 = vpop.permute.xlu0 %140
    %144 = vst.msk [vmem:[#allocation10] sm:$0xf] %vm127, %v139
    %145 = vst.msk [vmem:[#allocation10 + $0x4] sm:$0xf] %vm127, %v141
    // Predicated region
    $region22: #{tpu_custom_call.1} parent=1 // pred_check
      _
    $region23: #{tpu_custom_call.1} parent=1 // pred_check_branch
      %147 = sbr.rel (0) target = $region25
    $region24: #{tpu_custom_call.1} parent=1 // pred_region
      %s149 = ssub.s32 128, 128
      %150 = vsyncadd [#allocation4], %s149
      %s151 = sshll.u32 [#allocation7], 4
      %s152 = int_to_ptr.vmem [resolvable:$true] %s151
      %157 = dma.vmem_to_hbm [thread:$0]  %s152, 128, %s3, [#allocation4], 64, 64, 4
    $region25: #{tpu_custom_call.1} parent=1 // pred_fallthru
      _
    // Predicated region
    $region26: #{tpu_custom_call.1} parent=1 // pred_check
      _
    $region27: #{tpu_custom_call.1} parent=1 // pred_check_branch
      %159 = sbr.rel (0) target = $region29
    $region28: #{tpu_custom_call.1} parent=1 // pred_region
      %s161 = ssub.s32 128, 128
      %162 = vsyncadd [#allocation9], %s161
      %s163 = sshll.u32 [#allocation8], 4
      %s164 = int_to_ptr.vmem [resolvable:$true] %s163
      %169 = dma.vmem_to_hbm [thread:$0]  %s164, 128, %s4, [#allocation9], 64, 64, 4
    $region29: #{tpu_custom_call.1} parent=1 // pred_fallthru
      _
    // Predicated region
    $region30: #{tpu_custom_call.1} parent=1 // pred_check
      _
    $region31: #{tpu_custom_call.1} parent=1 // pred_check_branch
      %171 = sbr.rel (0) target = $region33
    $region32: #{tpu_custom_call.1} parent=1 // pred_region
      %s173 = ssub.s32 128, 128
      %174 = vsyncadd [#allocation9], %s173
      %s175 = sshll.u32 [#allocation10], 4
      %s176 = int_to_ptr.vmem [resolvable:$true] %s175
      %181 = dma.vmem_to_hbm [thread:$0]  %s176, 128, %s5, [#allocation9], 64, 64, 4
    $region33: #{tpu_custom_call.1} parent=1 // pred_fallthru
      _
    // Predicated region
    $region34: #{tpu_custom_call.1} parent=1 // pred_check
      _
    $region35: #{tpu_custom_call.1} parent=1 // pred_check_branch
      %183 = sbr.rel (0) target = $region37
    $region36: #{tpu_custom_call.1} parent=1 // pred_region
      %184 = dma.done [#allocation4], 128
    $region37: #{tpu_custom_call.1} parent=1 // pred_fallthru
      _
    // Predicated region
    $region38: #{tpu_custom_call.1} parent=1 // pred_check
      _
    $region39: #{tpu_custom_call.1} parent=1 // pred_check_branch
      %186 = sbr.rel (0) target = $region41
    $region40: #{tpu_custom_call.1} parent=1 // pred_region
      %187 = dma.done [#allocation9], 128
    $region41: #{tpu_custom_call.1} parent=1 // pred_fallthru
      _
    // Predicated region
    $region42: #{tpu_custom_call.1} parent=1 // pred_check
      _
    $region43: #{tpu_custom_call.1} parent=1 // pred_check_branch
      %189 = sbr.rel (0) target = $region45
    $region44: #{tpu_custom_call.1} parent=1 // pred_region
      %190 = dma.done [#allocation9], 128
    $region45: #{tpu_custom_call.1} parent=1 // pred_fallthru
      _
    %191 = vsyncpa [#allocation3], 1
    %192 = vsyncpa [#allocation6], 1
    %193 = vsyncpa [#allocation4], 1
    %194 = vsyncpa [#allocation9], 1

</llo_original>
